<compile_context>
chip_gen: v7x
topology: tpu7x:2x2x1
jax: 0.10.0
libtpu: 0.0.40
codegen_flags: <defaults>
</compile_context>

<pallas_src>
import functools
import math

import jax
import jax.numpy as jnp
from jax.experimental import pallas as pl
from jax.experimental.pallas import tpu as pltpu


def _round_up(x, m):
    return ((x + m - 1) // m) * m


# --------------------------------------------------------------------------
# One-time capability probe: per-BlockSpec pipeline_mode=pl.Buffered(1)
# (single-buffered resident table).  Compiled once, cached, off the hot path.
# --------------------------------------------------------------------------
@functools.lru_cache(maxsize=None)
def _buffered_single_ok():
    try:
        def _copy(x_ref, o_ref):
            o_ref[...] = x_ref[...]

        fn = pl.pallas_call(
            _copy,
            out_shape=jax.ShapeDtypeStruct((16, 128), jnp.float32),
            grid=(2,),
            in_specs=[pl.BlockSpec((8, 128), lambda i: (0, 0),
                                   pipeline_mode=pl.Buffered(buffer_count=1))],
            out_specs=pl.BlockSpec((8, 128), lambda i: (i, 0)),
        )
        jax.jit(fn).lower(
            jax.ShapeDtypeStruct((8, 128), jnp.float32)).compile()
        return True
    except Exception:
        return False


# --------------------------------------------------------------------------
# Kernel
# --------------------------------------------------------------------------
def _make_kernel(fold, band):
    """fold: atoms per output row; band: padded vocab (multiple of 128)."""

    def kernel(z_ref, table_ref, o_ref, onehot_ref):
        # z_ref:      (rows, fold)              int32
        # table_ref:  (fold*band, fold*D_pad)   f32  block-diagonal table
        # o_ref:      (rows, fold*D_pad)        f32
        # onehot_ref: (rows, fold*band)         f32  VMEM scratch
        rows = z_ref.shape[0]
        z = z_ref[...]
        ids = jax.lax.broadcasted_iota(jnp.int32, (rows, band), 1)
        for j in range(fold):  # small static unroll; band slices are lane-aligned
            onehot_ref[:, j * band:(j + 1) * band] = (
                ids == z[:, j:j + 1]).astype(onehot_ref.dtype)
        # Exactly one 1.0f per row -> result is bit-exact table[Z] (keep f32!).
        o_ref[...] = jnp.dot(
            onehot_ref[...], table_ref[...],
            preferred_element_type=jnp.float32,
        ).astype(o_ref.dtype)

    return kernel


def _build_call(n_fold, fold, band, lane_w, rows_blk, vmem_limit, buffered_ok):
    ktab = fold * band
    tbl_kwargs = {}
    if buffered_ok:
        # Constant index_map -> one resident VMEM buffer is enough.
        tbl_kwargs["pipeline_mode"] = pl.Buffered(buffer_count=1)
    return pl.pallas_call(
        _make_kernel(fold, band),
        out_shape=jax.ShapeDtypeStruct((n_fold, lane_w), jnp.float32),
        grid=(n_fold // rows_blk,),
        in_specs=[
            pl.BlockSpec((rows_blk, fold), lambda i: (i, 0)),        # indices
            pl.BlockSpec((ktab, lane_w), lambda i: (0, 0), **tbl_kwargs),  # table
        ],
        out_specs=pl.BlockSpec((rows_blk, lane_w), lambda i: (i, 0)),
        scratch_shapes=[pltpu.VMEM((rows_blk, ktab), jnp.float32)],   # one-hot
        compiler_params=pltpu.CompilerParams(
            dimension_semantics=("parallel",),
            vmem_limit_bytes=vmem_limit,
        ),
    )


# --------------------------------------------------------------------------
# Module wrapper (mirrors the PyTorch EmbeddingLayer)
# --------------------------------------------------------------------------
class EmbeddingLayer:
    """v_i = embedding(Z), as a Pallas TPU kernel."""

    def __init__(self, num_embeddings, embedding_dim, *, key=None, weight=None):
        self.num_embeddings = int(num_embeddings)
        self.embedding_dim = int(embedding_dim)
        if weight is None:
            if key is None:
                key = jax.random.PRNGKey(0)
            weight = jax.random.uniform(
                key, (self.num_embeddings, self.embedding_dim),
                dtype=jnp.float32, minval=-1.732, maxval=1.732)
        self.weight = jnp.asarray(weight, jnp.float32)

        # ---- constant preprocessing: done ONCE, never in the hot path ----
        D = self.embedding_dim
        if D >= 128:
            fold, d_pad = 1, _round_up(D, 128)
        else:
            fold = 1
            while fold * 2 <= 16 and 128 // (fold * 2) >= D:
                fold *= 2
            d_pad = 128 // fold                      # fold * d_pad == 128
        self._fold, self._d_pad = fold, d_pad
        self._band = _round_up(self.num_embeddings, 128)   # padded vocab

        tab = jnp.zeros((self._band, d_pad), jnp.float32)
        tab = tab.at[:self.num_embeddings, :D].set(self.weight)
        if fold == 1:
            rep = tab
        else:
            rep = jnp.kron(jnp.eye(fold, dtype=jnp.float32), tab)
        self._rep_table = jax.device_put(rep)        # (fold*band, fold*d_pad)
        self._fns = {}                               # shape -> jitted callable

    # ---------------- public API ----------------
    def __call__(self, Z):
        return self.forward(Z)

    def forward(self, Z):
        shape = tuple(int(s) for s in Z.shape)
        fn = self._fns.get(shape)
        if fn is None:
            fn = self._build(shape)
            self._fns[shape] = fn
        return fn(Z, self._rep_table)

    # ---------------- builder (per input shape, cached) ----------------
    def _build(self, shape):
        fold, d_pad, band = self._fold, self._d_pad, self._band
        D = self.embedding_dim
        lane_w = fold * d_pad                        # multiple of 128
        ktab = fold * band
        N = int(math.prod(shape)) if shape else 1
        unit = 8 * fold

        buffered_ok = _buffered_single_ok()
        tbl_bufs = 1 if buffered_ok else 2

        def vmem_need(blk):
            rb = blk // fold
            return 4 * (tbl_bufs * ktab * lane_w          # resident table
                        + 2 * rb * max(fold, 128)          # index tiles (lane pad)
                        + 2 * rb * lane_w                   # output tiles
                        + rb * ktab)                        # one-hot scratch

        # Big block (amortizes ~0.35us/step), but keep the one-hot scratch and
        # tiles inside a conservative budget (v7x: 64 MiB VMEM per TC).
        block = max(unit, (min(1024, _round_up(N, unit)) // unit) * unit)
        while block > unit and vmem_need(block) > (24 << 20):
            block = max(unit, (block // 2 // unit) * unit)

        N_pad = _round_up(N, block)
        n_fold = N_pad // fold
        rows_blk = block // fold                     # multiple of 8

        vmem_limit = int(min(max(vmem_need(block) * 2, 16 << 20), 32 << 20))

        call = _build_call(n_fold, fold, band, lane_w, rows_blk,
                           vmem_limit, buffered_ok)

        @jax.jit
        def run(Z, rep_table):
            Zi = Z.reshape(-1).astype(jnp.int32)
            # pad with index 0 (valid row); padded rows sliced off below
            Z_pad = jnp.zeros((N_pad,), jnp.int32).at[:N].set(Zi)
            out = call(Z_pad.reshape(n_fold, fold), rep_table)   # (n_fold, lane_w)
            out = out.reshape(N_pad, d_pad)[:N, :D]
            return out.reshape(shape + (D,))

        return run


# --------------------------------------------------------------------------
if __name__ == "__main__":
    key = jax.random.PRNGKey(0)
    k_table, k_z = jax.random.split(key)

    num_embeddings = 95    # e.g. atomic numbers
    embedding_dim = 32
    N = 50                 # number of atoms

    layer = EmbeddingLayer(num_embeddings, embedding_dim, key=k_table)
    Z = jax.random.randint(k_z, (N,), 0, num_embeddings, dtype=jnp.int32)

    v_i = layer(Z)
    v_i = jax.block_until_ready(v_i)

    # correctness check against plain JAX gather
    ref = layer.weight[Z]
    assert v_i.shape == (N, embedding_dim)
    assert v_i.dtype == jnp.float32
    assert jnp.array_equal(v_i, ref), "mismatch vs reference gather"

    print("KERNEL_OK")
</pallas_src>

<mosaic_0001>
module attributes {stable_mosaic.version = 11 : i64} {
  func.func @kernel(%arg0: i32, %arg1: memref<16x4xi32, #tpu.memory_space<vmem>>, %arg2: memref<512x128xf32, #tpu.memory_space<vmem>>, %arg3: memref<16x128xf32, #tpu.memory_space<vmem>>, %arg4: memref<16x512xf32, #tpu.memory_space<vmem>>) attributes {dimension_semantics = [#tpu.dimension_semantics<parallel>], iteration_bounds = array<i64: 1>, scalar_prefetch = 0 : i64, scratch_operands = 1 : i64, tpu.core_type = #tpu.core_type<tc>, window_params = [{transform_indices = @transform_0, window_bounds = array<i64: 16, 4>}, {pipeline_mode = #tpu.pipeline_mode<synchronous>, transform_indices = @transform_1, window_bounds = array<i64: 512, 128>}, {transform_indices = @transform_2, window_bounds = array<i64: 16, 128>}]} {
    %c0 = arith.constant 0 : index
    %c0_0 = arith.constant 0 : index
    %0 = vector.load %arg1[%c0, %c0_0] : memref<16x4xi32, #tpu.memory_space<vmem>>, vector<16x4xi32>
    %1 = tpu.iota {dimensions = array<i32: 1>} : vector<16x128xi32>
    %2 = vector.extract_strided_slice %0 {offsets = [0, 0], sizes = [16, 1], strides = [1, 1]} : vector<16x4xi32> to vector<16x1xi32>
    %3 = vector.broadcast %2 : vector<16x1xi32> to vector<16x128xi32>
    %4 = arith.cmpi eq, %1, %3 : vector<16x128xi32>
    %5 = arith.extui %4 : vector<16x128xi1> to vector<16x128xi32>
    %6 = arith.sitofp %5 : vector<16x128xi32> to vector<16x128xf32>
    %c0_1 = arith.constant 0 : index
    %c0_2 = arith.constant 0 : index
    %7 = vector.load %arg4[%c0_1, %c0_2] : memref<16x512xf32, #tpu.memory_space<vmem>>, vector<16x128xf32>
    tpu.vector_store %arg4[%c0_1, %c0_2], %6 {strides = array<i32>} : memref<16x512xf32, #tpu.memory_space<vmem>>, vector<16x128xf32>,
    %8 = vector.extract_strided_slice %0 {offsets = [0, 1], sizes = [16, 1], strides = [1, 1]} : vector<16x4xi32> to vector<16x1xi32>
    %9 = vector.broadcast %8 : vector<16x1xi32> to vector<16x128xi32>
    %10 = arith.cmpi eq, %1, %9 : vector<16x128xi32>
    %11 = arith.extui %10 : vector<16x128xi1> to vector<16x128xi32>
    %12 = arith.sitofp %11 : vector<16x128xi32> to vector<16x128xf32>
    %c0_3 = arith.constant 0 : index
    %c128 = arith.constant 128 : index
    %13 = vector.load %arg4[%c0_3, %c128] : memref<16x512xf32, #tpu.memory_space<vmem>>, vector<16x128xf32>
    tpu.vector_store %arg4[%c0_3, %c128], %12 {strides = array<i32>} : memref<16x512xf32, #tpu.memory_space<vmem>>, vector<16x128xf32>,
    %14 = vector.extract_strided_slice %0 {offsets = [0, 2], sizes = [16, 1], strides = [1, 1]} : vector<16x4xi32> to vector<16x1xi32>
    %15 = vector.broadcast %14 : vector<16x1xi32> to vector<16x128xi32>
    %16 = arith.cmpi eq, %1, %15 : vector<16x128xi32>
    %17 = arith.extui %16 : vector<16x128xi1> to vector<16x128xi32>
    %18 = arith.sitofp %17 : vector<16x128xi32> to vector<16x128xf32>
    %c0_4 = arith.constant 0 : index
    %c256 = arith.constant 256 : index
    %19 = vector.load %arg4[%c0_4, %c256] : memref<16x512xf32, #tpu.memory_space<vmem>>, vector<16x128xf32>
    tpu.vector_store %arg4[%c0_4, %c256], %18 {strides = array<i32>} : memref<16x512xf32, #tpu.memory_space<vmem>>, vector<16x128xf32>,
    %20 = vector.extract_strided_slice %0 {offsets = [0, 3], sizes = [16, 1], strides = [1, 1]} : vector<16x4xi32> to vector<16x1xi32>
    %21 = vector.broadcast %20 : vector<16x1xi32> to vector<16x128xi32>
    %22 = arith.cmpi eq, %1, %21 : vector<16x128xi32>
    %23 = arith.extui %22 : vector<16x128xi1> to vector<16x128xi32>
    %24 = arith.sitofp %23 : vector<16x128xi32> to vector<16x128xf32>
    %c0_5 = arith.constant 0 : index
    %c384 = arith.constant 384 : index
    %25 = vector.load %arg4[%c0_5, %c384] : memref<16x512xf32, #tpu.memory_space<vmem>>, vector<16x128xf32>
    tpu.vector_store %arg4[%c0_5, %c384], %24 {strides = array<i32>} : memref<16x512xf32, #tpu.memory_space<vmem>>, vector<16x128xf32>,
    %c0_6 = arith.constant 0 : index
    %c0_7 = arith.constant 0 : index
    %26 = vector.load %arg4[%c0_6, %c0_7] : memref<16x512xf32, #tpu.memory_space<vmem>>, vector<16x512xf32>
    %c0_8 = arith.constant 0 : index
    %c0_9 = arith.constant 0 : index
    %27 = vector.load %arg2[%c0_8, %c0_9] : memref<512x128xf32, #tpu.memory_space<vmem>>, vector<512x128xf32>
    %cst = arith.constant dense<0.000000e+00> : vector<16x128xf32>
    %28 = tpu.matmul %26, %27, %cst {dimension_numbers = #tpu.dot_dimension_numbers<[1], [0], [0], [1], [0, 0, 1, 1], [], []>} : vector<16x512xf32>, vector<512x128xf32>, vector<16x128xf32> -> vector<16x128xf32>
    %c0_10 = arith.constant 0 : index
    %c0_11 = arith.constant 0 : index
    %29 = vector.load %arg3[%c0_10, %c0_11] : memref<16x128xf32, #tpu.memory_space<vmem>>, vector<16x128xf32>
    tpu.vector_store %arg3[%c0_10, %c0_11], %28 {strides = array<i32>} : memref<16x128xf32, #tpu.memory_space<vmem>>, vector<16x128xf32>,
    return
  }
  func.func @transform_0(%arg0: i32) -> (i32, i32) {
    %c0_i32 = arith.constant 0 : i32
    %c0_i32_0 = arith.constant 0 : i32
    return %arg0, %c0_i32 : i32, i32
  }
  func.func @transform_1(%arg0: i32) -> (i32, i32) {
    %c0_i32 = arith.constant 0 : i32
    %c0_i32_0 = arith.constant 0 : i32
    %c0_i32_1 = arith.constant 0 : i32
    return %c0_i32, %c0_i32_0 : i32, i32
  }
  func.func @transform_2(%arg0: i32) -> (i32, i32) {
    %c0_i32 = arith.constant 0 : i32
    %c0_i32_0 = arith.constant 0 : i32
    return %arg0, %c0_i32 : i32, i32
  }
}

</mosaic_0001>

<llo_original>
// kernel: run.1
$region0: #{run.1}
  #allocation0 [shape = 'u32[]', space=smem, size = 0x4, offset = 0x4, fixed_abs, tag = 'smem constant byte address 0x4 - core index']
  #allocation1 [shape = 'u32[144,128]{1,0:T(1,128)}', space=vmem, size = 0x12000, scoped, tag = 'internal scratch']
  #allocation2 [shape = 'f32[16,512]{1,0:T(8,128)}', space=vmem, size = 0x8000, scoped, tag = 'scratch operand']
  %s0 = inlined_call_operand.vmem [shape: s32[16,4], index: 0, kind: input, shape index: {}]
  %s1 = inlined_call_operand.hbm [shape: f32[512,128], index: 1, kind: input, shape index: {}]
  %s2 = inlined_call_operand.vmem [shape: f32[16,128], index: 2, kind: output, shape index: {}]
  %s3 = sld [smem:[#allocation0]]
  $region22: #{run.1} parent=0
    _
  %s5 = ssub.s32 1, %s3
  %s6 = scalar_select 0, %s5, %s3
  $region1: #{run.1} parent=0
    #allocation3 [shape = 'u8[262144]{0}', space=vmem, size = 0x40000, scoped, tag = 'input window, operand 1, single buffered']
    #allocation4 [shape = 's32[1]{0}', space=sflag, size = 0x4, scoped, tag = 'scoped memory for run.1']
    %7 = vsyncpa [#allocation4], 0
    // Predicated region
    $region2: #{run.1} parent=1 // pred_check
      _
    $region3: #{run.1} parent=1 // pred_check_branch
      %9 = sbr.rel (0) target = $region5
    $region4: #{run.1} parent=1 // pred_region
      _
    $region5: #{run.1} parent=1 // pred_fallthru
      _
    // Predicated region
    $region6: #{run.1} parent=1 // pred_check
      _
    $region7: #{run.1} parent=1 // pred_check_branch
      %11 = sbr.rel (0) target = $region9
    $region8: #{run.1} parent=1 // pred_region
      %s13 = ssub.s32 8192, 8192
      %14 = vsyncadd [#allocation4], %s13
      %s15 = sshll.u32 [#allocation3], 4
      %s16 = int_to_ptr.vmem [resolvable:$true] %s15
      %21 = dma.hbm_to_vmem [thread:$0]  %s1, 8192, %s16, [#allocation4], 128, 128, 8
    $region9: #{run.1} parent=1 // pred_fallthru
      _
    // Predicated region
    $region10: #{run.1} parent=1 // pred_check
      _
    $region11: #{run.1} parent=1 // pred_check_branch
      %23 = sbr.rel (0) target = $region13
    $region12: #{run.1} parent=1 // pred_region
      %24 = dma.done [#allocation4], 8192
    $region13: #{run.1} parent=1 // pred_fallthru
      _
    %v25 = vld [vmem:[%s0] sm:$0xff]
    %v26 = vld [vmem:[%s0 + $0x8] sm:$0xff]
    %v27 = vlaneseq
    %v28 = vand.u32 %v27, 127
    %29 = vset.pattern.permute.xlu0 0
    %30 = vperm.xlu0 %29, %v25
    %v31 = vpop.permute.xlu0 %30
    %32 = vset.pattern.permute.xlu0 0
    %33 = vperm.xlu0 %32, %v26
    %v34 = vpop.permute.xlu0 %33
    %vm35 = vcmp.eq.s32.totalorder %v28, %v31
    %vm36 = vcmp.eq.s32.totalorder %v28, %v34
    %v37 = vsel %vm35, 1, 0
    %v38 = vsel %vm36, 1, 0
    %v39 = vcvt.s32.f32 %v37
    %v40 = vcvt.s32.f32 %v38
    %41 = vst [vmem:[#allocation2] sm:$0xff] %v39
    %42 = vst [vmem:[#allocation2 + $0x20] sm:$0xff] %v40
    %43 = vset.pattern.permute.xlu0 1
    %44 = vperm.xlu0 %43, %v25
    %v45 = vpop.permute.xlu0 %44
    %46 = vset.pattern.permute.xlu0 1
    %47 = vperm.xlu0 %46, %v26
    %v48 = vpop.permute.xlu0 %47
    %vm49 = vcmp.eq.s32.totalorder %v28, %v45
    %vm50 = vcmp.eq.s32.totalorder %v28, %v48
    %v51 = vsel %vm49, 1, 0
    %v52 = vsel %vm50, 1, 0
    %v53 = vcvt.s32.f32 %v51
    %v54 = vcvt.s32.f32 %v52
    %55 = vst [vmem:[#allocation2 + $0x8] sm:$0xff] %v53
    %56 = vst [vmem:[#allocation2 + $0x28] sm:$0xff] %v54
    %57 = vset.pattern.permute.xlu0 2
    %58 = vperm.xlu0 %57, %v25
    %v59 = vpop.permute.xlu0 %58
    %60 = vset.pattern.permute.xlu0 2
    %61 = vperm.xlu0 %60, %v26
    %v62 = vpop.permute.xlu0 %61
    %vm63 = vcmp.eq.s32.totalorder %v28, %v59
    %vm64 = vcmp.eq.s32.totalorder %v28, %v62
    %v65 = vsel %vm63, 1, 0
    %v66 = vsel %vm64, 1, 0
    %v67 = vcvt.s32.f32 %v65
    %v68 = vcvt.s32.f32 %v66
    %69 = vst [vmem:[#allocation2 + $0x10] sm:$0xff] %v67
    %70 = vst [vmem:[#allocation2 + $0x30] sm:$0xff] %v68
    %71 = vset.pattern.permute.xlu0 3
    %72 = vperm.xlu0 %71, %v25
    %v73 = vpop.permute.xlu0 %72
    %74 = vset.pattern.permute.xlu0 3
    %75 = vperm.xlu0 %74, %v26
    %v76 = vpop.permute.xlu0 %75
    %vm77 = vcmp.eq.s32.totalorder %v28, %v73
    %vm78 = vcmp.eq.s32.totalorder %v28, %v76
    %v79 = vsel %vm77, 1, 0
    %v80 = vsel %vm78, 1, 0
    %v81 = vcvt.s32.f32 %v79
    %v82 = vcvt.s32.f32 %v80
    %83 = vst [vmem:[#allocation2 + $0x18] sm:$0xff] %v81
    %84 = vst [vmem:[#allocation2 + $0x38] sm:$0xff] %v82
    %v85 = vld [vmem:[#allocation2] sm:$0xff]
    %v86 = vld [vmem:[#allocation2 + $0x8] sm:$0xff]
    %v87 = vld [vmem:[#allocation2 + $0x10] sm:$0xff]
    %v88 = vld [vmem:[#allocation2 + $0x18] sm:$0xff]
    %v89 = vld [vmem:[#allocation2 + $0x20] sm:$0xff]
    %v90 = vld [vmem:[#allocation2 + $0x28] sm:$0xff]
    %v91 = vld [vmem:[#allocation2 + $0x30] sm:$0xff]
    %v92 = vld [vmem:[#allocation2 + $0x38] sm:$0xff]
    %v93 = vld [vmem:[#allocation3] sm:$0xff]
    %v94 = vld [vmem:[#allocation3 + $0x8] sm:$0xff]
    %v95 = vld [vmem:[#allocation3 + $0x10] sm:$0xff]
    %v96 = vld [vmem:[#allocation3 + $0x18] sm:$0xff]
    %v97 = vld [vmem:[#allocation3 + $0x20] sm:$0xff]
    %v98 = vld [vmem:[#allocation3 + $0x28] sm:$0xff]
    %v99 = vld [vmem:[#allocation3 + $0x30] sm:$0xff]
    %v100 = vld [vmem:[#allocation3 + $0x38] sm:$0xff]
    %v101 = vld [vmem:[#allocation3 + $0x40] sm:$0xff]
    %v102 = vld [vmem:[#allocation3 + $0x48] sm:$0xff]
    %v103 = vld [vmem:[#allocation3 + $0x50] sm:$0xff]
    %v104 = vld [vmem:[#allocation3 + $0x58] sm:$0xff]
    %v105 = vld [vmem:[#allocation3 + $0x60] sm:$0xff]
    %v106 = vld [vmem:[#allocation3 + $0x68] sm:$0xff]
    %v107 = vld [vmem:[#allocation3 + $0x70] sm:$0xff]
    %v108 = vld [vmem:[#allocation3 + $0x78] sm:$0xff]
    %v109 = vld [vmem:[#allocation3 + $0x80] sm:$0xff]
    %v110 = vld [vmem:[#allocation3 + $0x88] sm:$0xff]
    %v111 = vld [vmem:[#allocation3 + $0x90] sm:$0xff]
    %v112 = vld [vmem:[#allocation3 + $0x98] sm:$0xff]
    %v113 = vld [vmem:[#allocation3 + $0xa0] sm:$0xff]
    %v114 = vld [vmem:[#allocation3 + $0xa8] sm:$0xff]
    %v115 = vld [vmem:[#allocation3 + $0xb0] sm:$0xff]
    %v116 = vld [vmem:[#allocation3 + $0xb8] sm:$0xff]
    %v117 = vld [vmem:[#allocation3 + $0xc0] sm:$0xff]
    %v118 = vld [vmem:[#allocation3 + $0xc8] sm:$0xff]
    %v119 = vld [vmem:[#allocation3 + $0xd0] sm:$0xff]
    %v120 = vld [vmem:[#allocation3 + $0xd8] sm:$0xff]
    %v121 = vld [vmem:[#allocation3 + $0xe0] sm:$0xff]
    %v122 = vld [vmem:[#allocation3 + $0xe8] sm:$0xff]
    %v123 = vld [vmem:[#allocation3 + $0xf0] sm:$0xff]
    %v124 = vld [vmem:[#allocation3 + $0xf8] sm:$0xff]
    %v125 = vld [vmem:[#allocation3 + $0x100] sm:$0xff]
    %v126 = vld [vmem:[#allocation3 + $0x108] sm:$0xff]
    %v127 = vld [vmem:[#allocation3 + $0x110] sm:$0xff]
    %v128 = vld [vmem:[#allocation3 + $0x118] sm:$0xff]
    %v129 = vld [vmem:[#allocation3 + $0x120] sm:$0xff]
    %v130 = vld [vmem:[#allocation3 + $0x128] sm:$0xff]
    %v131 = vld [vmem:[#allocation3 + $0x130] sm:$0xff]
    %v132 = vld [vmem:[#allocation3 + $0x138] sm:$0xff]
    %v133 = vld [vmem:[#allocation3 + $0x140] sm:$0xff]
    %v134 = vld [vmem:[#allocation3 + $0x148] sm:$0xff]
    %v135 = vld [vmem:[#allocation3 + $0x150] sm:$0xff]
    %v136 = vld [vmem:[#allocation3 + $0x158] sm:$0xff]
    %v137 = vld [vmem:[#allocation3 + $0x160] sm:$0xff]
    %v138 = vld [vmem:[#allocation3 + $0x168] sm:$0xff]
    %v139 = vld [vmem:[#allocation3 + $0x170] sm:$0xff]
    %v140 = vld [vmem:[#allocation3 + $0x178] sm:$0xff]
    %v141 = vld [vmem:[#allocation3 + $0x180] sm:$0xff]
    %v142 = vld [vmem:[#allocation3 + $0x188] sm:$0xff]
    %v143 = vld [vmem:[#allocation3 + $0x190] sm:$0xff]
    %v144 = vld [vmem:[#allocation3 + $0x198] sm:$0xff]
    %v145 = vld [vmem:[#allocation3 + $0x1a0] sm:$0xff]
    %v146 = vld [vmem:[#allocation3 + $0x1a8] sm:$0xff]
    %v147 = vld [vmem:[#allocation3 + $0x1b0] sm:$0xff]
    %v148 = vld [vmem:[#allocation3 + $0x1b8] sm:$0xff]
    %v149 = vld [vmem:[#allocation3 + $0x1c0] sm:$0xff]
    %v150 = vld [vmem:[#allocation3 + $0x1c8] sm:$0xff]
    %v151 = vld [vmem:[#allocation3 + $0x1d0] sm:$0xff]
    %v152 = vld [vmem:[#allocation3 + $0x1d8] sm:$0xff]
    %v153 = vld [vmem:[#allocation3 + $0x1e0] sm:$0xff]
    %v154 = vld [vmem:[#allocation3 + $0x1e8] sm:$0xff]
    %v155 = vld [vmem:[#allocation3 + $0x1f0] sm:$0xff]
    %v156 = vld [vmem:[#allocation3 + $0x1f8] sm:$0xff]
    %157 = vmatprep.subr.mxu0 0.0
    %158 = vmatpush1.msra.mxu0 %v93
    %159 = vmatprep.subr.mxu0 0.0
    %160 = vmatpush1.msra.mxu0 %v94
    %161 = vmatprep.subr.mxu0 0.0
    %162 = vmatpush1.msra.mxu0 %v95
    %163 = vmatprep.subr.mxu0 0.0
    %164 = vmatpush1.msra.mxu0 %v96
    %165 = vmatprep.subr.mxu0 0.0
    %166 = vmatpush1.msra.mxu0 %v97
    %167 = vmatprep.subr.mxu0 0.0
    %168 = vmatpush1.msra.mxu0 %v98
    %169 = vmatprep.subr.mxu0 0.0
    %170 = vmatpush1.msra.mxu0 %v99
    %171 = vmatprep.subr.mxu0 0.0
    %172 = vmatpush1.msra.mxu0 %v100
    %173 = vmatprep.subr.mxu0 0.0
    %174 = vmatpush1.msra.mxu0 %v101
    %175 = vmatprep.subr.mxu0 0.0
    %176 = vmatpush1.msra.mxu0 %v102
    %177 = vmatprep.subr.mxu0 0.0
    %178 = vmatpush1.msra.mxu0 %v103
    %179 = vmatprep.subr.mxu0 0.0
    %180 = vmatpush1.msra.mxu0 %v104
    %181 = vmatprep.subr.mxu0 0.0
    %182 = vmatpush1.msra.mxu0 %v105
    %183 = vmatprep.subr.mxu0 0.0
    %184 = vmatpush1.msra.mxu0 %v106
    %185 = vmatprep.subr.mxu0 0.0
    %186 = vmatpush1.msra.mxu0 %v107
    %187 = vmatprep.subr.mxu0 0.0
    %188 = vmatpush1.msra.mxu0 %v108
    %189 = vmatprep.subr.mxu0 0.0
    %190 = vmatpush1.msra.mxu0 %v109
    %191 = vmatprep.subr.mxu0 0.0
    %192 = vmatpush1.msra.mxu0 %v110
    %193 = vmatprep.subr.mxu0 0.0
    %194 = vmatpush1.msra.mxu0 %v111
    %195 = vmatprep.subr.mxu0 0.0
    %196 = vmatpush1.msra.mxu0 %v112
    %197 = vmatprep.subr.mxu0 0.0
    %198 = vmatpush1.msra.mxu0 %v113
    %199 = vmatprep.subr.mxu0 0.0
    %200 = vmatpush1.msra.mxu0 %v114
    %201 = vmatprep.subr.mxu0 0.0
    %202 = vmatpush1.msra.mxu0 %v115
    %203 = vmatprep.subr.mxu0 0.0
    %204 = vmatpush1.msra.mxu0 %v116
    %205 = vmatprep.subr.mxu0 0.0
    %206 = vmatpush1.msra.mxu0 %v117
    %207 = vmatprep.subr.mxu0 0.0
    %208 = vmatpush1.msra.mxu0 %v118
    %209 = vmatprep.subr.mxu0 0.0
    %210 = vmatpush1.msra.mxu0 %v119
    %211 = vmatprep.subr.mxu0 0.0
    %212 = vmatpush1.msra.mxu0 %v120
    %213 = vmatprep.subr.mxu0 0.0
    %214 = vmatpush1.msra.mxu0 %v121
    %215 = vmatprep.subr.mxu0 0.0
    %216 = vmatpush1.msra.mxu0 %v122
    %217 = vmatprep.subr.mxu0 0.0
    %218 = vmatpush1.msra.mxu0 %v123
    %219 = vmatprep.subr.mxu0 0.0
    %220 = vmatpush1.msra.mxu0 %v124
    %221 = vmatprep.mubr.f32.mxu0 %v86
    %222 = vmatmul.mubr.f32.gmra.mrb[0].mxu0 %v85
    %v223 = vpop.f32.mrb[0].mxu0
    %v224 = vadd.f32 0.0, %v223
    %v225 = vpop.f32.mrb[0].mxu0
    %226 = vmatprep.mubr.f32.mxu0 %v90
    %227 = vmatmul.mubr.f32.gmra.mrb[0].mxu0 %v89
    %v228 = vpop.f32.mrb[0].mxu0
    %v229 = vadd.f32 0.0, %v228
    %v230 = vpop.f32.mrb[0].mxu0
    %231 = vdwg.mxu0
    %232 = vmatprep.subr.mxu0 0.0
    %233 = vmatpush1.msra.mxu0 %v125
    %234 = vmatprep.subr.mxu0 0.0
    %235 = vmatpush1.msra.mxu0 %v126
    %236 = vmatprep.subr.mxu0 0.0
    %237 = vmatpush1.msra.mxu0 %v127
    %238 = vmatprep.subr.mxu0 0.0
    %239 = vmatpush1.msra.mxu0 %v128
    %240 = vmatprep.subr.mxu0 0.0
    %241 = vmatpush1.msra.mxu0 %v129
    %242 = vmatprep.subr.mxu0 0.0
    %243 = vmatpush1.msra.mxu0 %v130
    %244 = vmatprep.subr.mxu0 0.0
    %245 = vmatpush1.msra.mxu0 %v131
    %246 = vmatprep.subr.mxu0 0.0
    %247 = vmatpush1.msra.mxu0 %v132
    %248 = vmatprep.subr.mxu0 0.0
    %249 = vmatpush1.msra.mxu0 %v133
    %250 = vmatprep.subr.mxu0 0.0
    %251 = vmatpush1.msra.mxu0 %v134
    %252 = vmatprep.subr.mxu0 0.0
    %253 = vmatpush1.msra.mxu0 %v135
    %254 = vmatprep.subr.mxu0 0.0
    %255 = vmatpush1.msra.mxu0 %v136
    %256 = vmatprep.subr.mxu0 0.0
    %257 = vmatpush1.msra.mxu0 %v137
    %258 = vmatprep.subr.mxu0 0.0
    %259 = vmatpush1.msra.mxu0 %v138
    %260 = vmatprep.subr.mxu0 0.0
    %261 = vmatpush1.msra.mxu0 %v139
    %262 = vmatprep.subr.mxu0 0.0
    %263 = vmatpush1.msra.mxu0 %v140
    %264 = vmatprep.subr.mxu0 0.0
    %265 = vmatpush1.msra.mxu0 %v141
    %266 = vmatprep.subr.mxu0 0.0
    %267 = vmatpush1.msra.mxu0 %v142
    %268 = vmatprep.subr.mxu0 0.0
    %269 = vmatpush1.msra.mxu0 %v143
    %270 = vmatprep.subr.mxu0 0.0
    %271 = vmatpush1.msra.mxu0 %v144
    %272 = vmatprep.subr.mxu0 0.0
    %273 = vmatpush1.msra.mxu0 %v145
    %274 = vmatprep.subr.mxu0 0.0
    %275 = vmatpush1.msra.mxu0 %v146
    %276 = vmatprep.subr.mxu0 0.0
    %277 = vmatpush1.msra.mxu0 %v147
    %278 = vmatprep.subr.mxu0 0.0
    %279 = vmatpush1.msra.mxu0 %v148
    %280 = vmatprep.subr.mxu0 0.0
    %281 = vmatpush1.msra.mxu0 %v149
    %282 = vmatprep.subr.mxu0 0.0
    %283 = vmatpush1.msra.mxu0 %v150
    %284 = vmatprep.subr.mxu0 0.0
    %285 = vmatpush1.msra.mxu0 %v151
    %286 = vmatprep.subr.mxu0 0.0
    %287 = vmatpush1.msra.mxu0 %v152
    %288 = vmatprep.subr.mxu0 0.0
    %289 = vmatpush1.msra.mxu0 %v153
    %290 = vmatprep.subr.mxu0 0.0
    %291 = vmatpush1.msra.mxu0 %v154
    %292 = vmatprep.subr.mxu0 0.0
    %293 = vmatpush1.msra.mxu0 %v155
    %294 = vmatprep.subr.mxu0 0.0
    %295 = vmatpush1.msra.mxu0 %v156
    %296 = vmatprep.mubr.f32.mxu0 %v88
    %297 = vmatmul.mubr.f32.gmra.mrb[0].mxu0 %v87
    %v298 = vpop.f32.mrb[0].mxu0
    %v299 = vadd.f32 %v224, %v298
    %v300 = vpop.f32.mrb[0].mxu0
    %301 = vmatprep.mubr.f32.mxu0 %v92
    %302 = vmatmul.mubr.f32.gmra.mrb[0].mxu0 %v91
    %v303 = vpop.f32.mrb[0].mxu0
    %v304 = vadd.f32 %v229, %v303
    %v305 = vpop.f32.mrb[0].mxu0
    %306 = vdwg.mxu0
    %307 = vst [vmem:[%s2] sm:$0xff] %v299
    %308 = vst [vmem:[%s2 + $0x8] sm:$0xff] %v304
    // Predicated region
    $region14: #{run.1} parent=1 // pred_check
      _
    $region15: #{run.1} parent=1 // pred_check_branch
      %310 = sbr.rel (0) target = $region17
    $region16: #{run.1} parent=1 // pred_region
      _
    $region17: #{run.1} parent=1 // pred_fallthru
      _
    // Predicated region
    $region18: #{run.1} parent=1 // pred_check
      _
    $region19: #{run.1} parent=1 // pred_check_branch
      %312 = sbr.rel (0) target = $region21
    $region20: #{run.1} parent=1 // pred_region
      _
    $region21: #{run.1} parent=1 // pred_fallthru
      _
    %313 = vsyncpa [#allocation4], 1

</llo_original>
